<compile_context>
chip_gen: v7x
topology: tpu7x:2x2x1
jax: 0.10.0
libtpu: 0.0.40
codegen_flags: <defaults>
</compile_context>

<pallas_src>
import functools

import jax
import jax.numpy as jnp
from jax.experimental import pallas as pl
from jax.experimental.pallas import tpu as pltpu


def _round_up(x, m):
    return ((x + m - 1) // m) * m


def _pick_spatial_tile(hw, cap=2048):
    """Largest divisor of hw <= cap, preferring multiples of 128."""
    if hw <= cap:
        return hw
    best = hw
    for t in range(cap, 0, -1):
        if hw % t == 0:
            if t % 128 == 0:
                return t
            if best == hw:
                best = t
    return best


def _resblock_kernel(W, LPAD, x_ref, w1_ref, t1_ref, a_ref, w2_ref, t2_ref,
                     o_ref, xpad_ref, rpad_ref, col_ref):
    """Fused residual block for one batch block (channels on sublanes,
    flattened spatial H*W on lanes).

    x_ref   : (Bt, C, H*W)  f32 input block (also the residual)
    w*_ref  : (C, 9*C)      conv weights with BN scale folded (compute dtype)
    t*_ref  : (C, 1)        f32 folded BN shift (conv bias folded in)
    a_ref   : (1,)          PReLU slope, SMEM scalar
    o_ref   : (Bt, C, H*W)  output block
    xpad_ref, rpad_ref : (C, PB)  flattened halo buffers (compute dtype),
                          interior at lane offset LPAD (128-aligned)
    col_ref : (9*C, S)      im2col strip scratch (compute dtype)
    """
    Bt, C, HW = x_ref.shape
    S = col_ref.shape[1]
    n_strips = HW // S
    alpha = a_ref[0]

    # Hoist the small per-step loads out of the image/strip loops.
    w1 = w1_ref[...]
    w2 = w2_ref[...]
    t1 = t1_ref[...]
    t2 = t2_ref[...]

    def zero_halo(buf):
        z = jnp.zeros((C, W + 1), buf.dtype)
        buf[:, LPAD - W - 1:LPAD] = z                      # top pad row + 1
        buf[:, LPAD + HW:LPAD + HW + W + 1] = z            # bottom pad row + 1

    # Scratch is uninitialized on each core's first step when the batch axis
    # is sharded across TensorCores -> re-zero the (tiny) halo strips per step.
    zero_halo(xpad_ref)
    zero_halo(rpad_ref)

    def build_col(src, j0):
        # Left/right (W-axis) zero padding of the flattened rows is handled by
        # a compile-time edge mask instead of a physically padded W axis.
        lane = jax.lax.broadcasted_iota(jnp.int32, (C, S), 1) + j0
        if W & (W - 1) == 0:
            col_in_row = jnp.bitwise_and(lane, W - 1)
        else:
            col_in_row = lane % W
        left_edge = col_in_row == 0
        right_edge = col_in_row == (W - 1)
        for dh in range(3):
            for dw in range(3):
                tap = dh * 3 + dw
                start = LPAD + (dh - 1) * W + (dw - 1) + j0
                win = src[:, start:start + S]
                if dw == 0:
                    win = jnp.where(left_edge, jnp.zeros_like(win), win)
                elif dw == 2:
                    win = jnp.where(right_edge, jnp.zeros_like(win), win)
                col_ref[tap * C:(tap + 1) * C, :] = win

    for i in range(Bt):
        # Place image i into the lane-aligned interior of the x halo buffer.
        xpad_ref[:, LPAD:LPAD + HW] = x_ref[i].astype(xpad_ref.dtype)

        # ---- conv1 (BN1 scale folded into w1, bias into t1) + PReLU --------
        for k in range(n_strips):
            j0 = k * S
            build_col(xpad_ref, j0)
            y = jnp.dot(w1, col_ref[...], preferred_element_type=jnp.float32)
            y = y + t1
            y = jnp.where(y > 0, y, alpha * y)
            rpad_ref[:, LPAD + j0:LPAD + j0 + S] = y.astype(rpad_ref.dtype)

        # ---- conv2 (BN2 folded) + residual add with the original f32 x -----
        for k in range(n_strips):
            j0 = k * S
            build_col(rpad_ref, j0)
            y = jnp.dot(w2, col_ref[...], preferred_element_type=jnp.float32)
            y = y + t2
            y = y + x_ref[i, :, j0:j0 + S].astype(jnp.float32)
            o_ref[i, :, j0:j0 + S] = y.astype(o_ref.dtype)


def residual_block_forward(x_nchw, params, *, compute_dtype=jnp.bfloat16,
                           block_n=1, spatial_tile=None):
    """PyTorch-equivalent forward pass. x_nchw: (N, C, H, W) float32.

    compute_dtype is the MXU-operand / im2col dtype (bf16 is MXU-native on
    v5e/v6e/v7x); accumulation, BN/PReLU and the residual add are f32.
    Note: with bf16 operands the conv1 output is re-quantized to bf16 before
    conv2 (double rounding) -- covered by the loose tolerance in the test.
    """
    (w1, b1, s1, t1, a, w2, b2, s2, t2) = params
    N, C, H, W = x_nchw.shape
    HW = H * W
    assert N % block_n == 0

    x = x_nchw.reshape(N, C, HW)                 # zero-copy view of NCHW

    # Fold BN scale into the conv weights and conv bias into the BN shift:
    #   bn(conv(x) + b) = (s .* W) (*) x + (s*b + t)
    def fold(w_hwio, b, s, t):
        wm = jnp.transpose(w_hwio, (3, 0, 1, 2)).reshape(C, 9 * C)  # cout,(kh,kw,cin)
        wm = (s.reshape(C, 1) * wm).astype(compute_dtype)
        sh = (t + s * b).reshape(C, 1).astype(jnp.float32)
        return wm, sh

    w1m, t1f = fold(w1, b1, s1, t1)
    w2m, t2f = fold(w2, b2, s2, t2)
    a_s = a.reshape(1).astype(jnp.float32)

    S = spatial_tile if spatial_tile is not None else _pick_spatial_tile(HW)
    assert HW % S == 0
    LPAD = _round_up(W + 1, 128)                 # interior starts lane-aligned
    PB = _round_up(LPAD + HW + W + 1, 128)       # flattened halo-buffer pitch

    itemsize = jnp.dtype(compute_dtype).itemsize
    est = (2 * 2 * block_n * C * HW * 4                        # dbl-buffered in/out
           + (2 * C * PB + 9 * C * S + 2 * 9 * C * C) * itemsize
           + (4 << 20))                                        # margin
    vmem_limit = int(min(max(est, 32 << 20), 48 << 20))        # 48 MiB: v7x-safe

    grid_spec = pltpu.PrefetchScalarGridSpec(
        num_scalar_prefetch=0,
        grid=(N // block_n,),
        in_specs=[
            pl.BlockSpec((block_n, C, HW), lambda n: (n, 0, 0)),    # x
            pl.BlockSpec((C, 9 * C), lambda n: (0, 0)),             # w1 * s1
            pl.BlockSpec((C, 1), lambda n: (0, 0)),                 # t1 + s1*b1
            pl.BlockSpec(memory_space=pltpu.MemorySpace.SMEM),      # PReLU a
            pl.BlockSpec((C, 9 * C), lambda n: (0, 0)),             # w2 * s2
            pl.BlockSpec((C, 1), lambda n: (0, 0)),                 # t2 + s2*b2
        ],
        out_specs=pl.BlockSpec((block_n, C, HW), lambda n: (n, 0, 0)),
        scratch_shapes=[
            pltpu.VMEM((C, PB), compute_dtype),        # x halo buffer
            pltpu.VMEM((C, PB), compute_dtype),        # conv1-output halo buf
            pltpu.VMEM((9 * C, S), compute_dtype),     # im2col strip
        ],
    )

    out = pl.pallas_call(
        functools.partial(_resblock_kernel, W, LPAD),
        out_shape=jax.ShapeDtypeStruct((N, C, HW), x_nchw.dtype),
        grid_spec=grid_spec,
        compiler_params=pltpu.CompilerParams(
            dimension_semantics=("parallel",),         # batch blocks independent
            vmem_limit_bytes=vmem_limit,
        ),
    )(x, w1m, t1f, a_s, w2m, t2f)

    return out.reshape(N, C, H, W)


def make_params(key, channels, eps=1e-5):
    """Deterministic synthetic parameters (HWIO conv weights, eval-mode BN)."""
    ks = jax.random.split(key, 6)
    C = channels

    def conv_init(k):
        fan_in = C * 3 * 3
        bound = 1.0 / jnp.sqrt(fan_in)
        return jax.random.uniform(k, (3, 3, C, C), jnp.float32, -bound, bound)

    w1 = conv_init(ks[0])
    b1 = jax.random.uniform(ks[1], (C,), jnp.float32, -0.1, 0.1)
    w2 = conv_init(ks[2])
    b2 = jax.random.uniform(ks[3], (C,), jnp.float32, -0.1, 0.1)

    def bn_init(k):
        kg, kb, km, kv = jax.random.split(k, 4)
        gamma = jax.random.uniform(kg, (C,), jnp.float32, 0.5, 1.5)
        beta = jax.random.uniform(kb, (C,), jnp.float32, -0.5, 0.5)
        mean = jax.random.uniform(km, (C,), jnp.float32, -0.5, 0.5)
        var = jax.random.uniform(kv, (C,), jnp.float32, 0.5, 1.5)
        scale = gamma / jnp.sqrt(var + eps)
        shift = beta - mean * scale
        return scale, shift

    s1, t1 = bn_init(ks[4])
    s2, t2 = bn_init(ks[5])

    a = jnp.full((1,), 0.25, jnp.float32)     # nn.PReLU() default init

    return (w1, b1, s1, t1, a, w2, b2, s2, t2)


def reference_forward(x_nchw, params):
    """Pure-JAX reference (NHWC convs), for correctness checking only."""
    (w1, b1, s1, t1, a, w2, b2, s2, t2) = params
    x = jnp.transpose(x_nchw, (0, 2, 3, 1))

    def conv(v, w, b):
        y = jax.lax.conv_general_dilated(
            v, w, window_strides=(1, 1), padding='SAME',
            dimension_numbers=('NHWC', 'HWIO', 'NHWC'))
        return y + b.reshape(1, 1, 1, -1)

    r = conv(x, w1, b1)
    r = r * s1.reshape(1, 1, 1, -1) + t1.reshape(1, 1, 1, -1)
    r = jnp.where(r > 0, r, a[0] * r)
    r = conv(r, w2, b2)
    r = r * s2.reshape(1, 1, 1, -1) + t2.reshape(1, 1, 1, -1)
    out = x + r
    return jnp.transpose(out, (0, 3, 1, 2))


if __name__ == "__main__":
    N, C, H, W = 2, 4, 16, 16
    key = jax.random.PRNGKey(0)
    kx, kp = jax.random.split(key)
    x = jax.random.normal(kx, (N, C, H, W), jnp.float32)
    params = make_params(kp, C)

    ref = jax.block_until_ready(reference_forward(x, params))

    # f32 MXU-operand path (closest to the PyTorch module's f32 conv).
    out_f32 = jax.block_until_ready(
        residual_block_forward(x, params, compute_dtype=jnp.float32))
    assert out_f32.shape == (N, C, H, W)
    assert jnp.allclose(out_f32, ref, atol=1e-4, rtol=1e-4), (
        float(jnp.max(jnp.abs(out_f32 - ref))))

    # Default bf16-operand path (MXU-native on v5e/v6e/v7x); loose tolerance.
    out_bf16 = jax.block_until_ready(residual_block_forward(x, params))
    assert out_bf16.shape == (N, C, H, W)
    assert jnp.allclose(out_bf16, ref, atol=1e-1, rtol=1e-1), (
        float(jnp.max(jnp.abs(out_bf16 - ref))))

    print("KERNEL_OK")
</pallas_src>

<mosaic_0001>
module attributes {stable_mosaic.version = 11 : i64} {
  func.func @_resblock_kernel(%arg0: i32, %arg1: memref<1x4x256xf32, #tpu.memory_space<vmem>>, %arg2: memref<4x36xf32, #tpu.memory_space<vmem>>, %arg3: memref<4x1xf32, #tpu.memory_space<vmem>>, %arg4: memref<1xf32, #tpu.memory_space<smem>>, %arg5: memref<4x36xf32, #tpu.memory_space<vmem>>, %arg6: memref<4x1xf32, #tpu.memory_space<vmem>>, %arg7: memref<1x4x256xf32, #tpu.memory_space<vmem>>, %arg8: memref<4x512xf32, #tpu.memory_space<vmem>>, %arg9: memref<4x512xf32, #tpu.memory_space<vmem>>, %arg10: memref<36x256xf32, #tpu.memory_space<vmem>>) attributes {dimension_semantics = [#tpu.dimension_semantics<parallel>], iteration_bounds = array<i64: 2>, scalar_prefetch = 0 : i64, scratch_operands = 3 : i64, tpu.core_type = #tpu.core_type<tc>, window_params = [{transform_indices = @transform_0, window_bounds = array<i64: 1, 4, 256>}, {pipeline_mode = #tpu.pipeline_mode<synchronous>, transform_indices = @transform_1, window_bounds = array<i64: 4, 36>}, {pipeline_mode = #tpu.pipeline_mode<synchronous>, transform_indices = @transform_2, window_bounds = array<i64: 4, 1>}, {transform_indices = @transform_3, window_bounds = array<i64: 1>}, {pipeline_mode = #tpu.pipeline_mode<synchronous>, transform_indices = @transform_4, window_bounds = array<i64: 4, 36>}, {pipeline_mode = #tpu.pipeline_mode<synchronous>, transform_indices = @transform_5, window_bounds = array<i64: 4, 1>}, {transform_indices = @transform_6, window_bounds = array<i64: 1, 4, 256>}]} {
    %c0 = arith.constant 0 : index
    %0 = memref.load %arg4[%c0] : memref<1xf32, #tpu.memory_space<smem>>
    %c0_0 = arith.constant 0 : index
    %c0_1 = arith.constant 0 : index
    %1 = vector.load %arg2[%c0_0, %c0_1] : memref<4x36xf32, #tpu.memory_space<vmem>>, vector<4x36xf32>
    %c0_2 = arith.constant 0 : index
    %c0_3 = arith.constant 0 : index
    %2 = vector.load %arg5[%c0_2, %c0_3] : memref<4x36xf32, #tpu.memory_space<vmem>>, vector<4x36xf32>
    %c0_4 = arith.constant 0 : index
    %c0_5 = arith.constant 0 : index
    %3 = vector.load %arg3[%c0_4, %c0_5] : memref<4x1xf32, #tpu.memory_space<vmem>>, vector<4x1xf32>
    %c0_6 = arith.constant 0 : index
    %c0_7 = arith.constant 0 : index
    %4 = vector.load %arg6[%c0_6, %c0_7] : memref<4x1xf32, #tpu.memory_space<vmem>>, vector<4x1xf32>
    %cst = arith.constant 0.000000e+00 : f32
    %5 = vector.broadcast %cst : f32 to vector<4x17xf32>
    %c0_8 = arith.constant 0 : index
    %c111 = arith.constant 111 : index
    %6 = vector.load %arg8[%c0_8, %c111] : memref<4x512xf32, #tpu.memory_space<vmem>>, vector<4x17xf32>
    tpu.vector_store %arg8[%c0_8, %c111], %5 {strides = array<i32>} : memref<4x512xf32, #tpu.memory_space<vmem>>, vector<4x17xf32>,
    %c0_9 = arith.constant 0 : index
    %c384 = arith.constant 384 : index
    %7 = vector.load %arg8[%c0_9, %c384] : memref<4x512xf32, #tpu.memory_space<vmem>>, vector<4x17xf32>
    tpu.vector_store %arg8[%c0_9, %c384], %5 {strides = array<i32>} : memref<4x512xf32, #tpu.memory_space<vmem>>, vector<4x17xf32>,
    %cst_10 = arith.constant 0.000000e+00 : f32
    %8 = vector.broadcast %cst_10 : f32 to vector<4x17xf32>
    %c0_11 = arith.constant 0 : index
    %c111_12 = arith.constant 111 : index
    %9 = vector.load %arg9[%c0_11, %c111_12] : memref<4x512xf32, #tpu.memory_space<vmem>>, vector<4x17xf32>
    tpu.vector_store %arg9[%c0_11, %c111_12], %8 {strides = array<i32>} : memref<4x512xf32, #tpu.memory_space<vmem>>, vector<4x17xf32>,
    %c0_13 = arith.constant 0 : index
    %c384_14 = arith.constant 384 : index
    %10 = vector.load %arg9[%c0_13, %c384_14] : memref<4x512xf32, #tpu.memory_space<vmem>>, vector<4x17xf32>
    tpu.vector_store %arg9[%c0_13, %c384_14], %8 {strides = array<i32>} : memref<4x512xf32, #tpu.memory_space<vmem>>, vector<4x17xf32>,
    %c0_15 = arith.constant 0 : index
    %c0_16 = arith.constant 0 : index
    %c0_17 = arith.constant 0 : index
    %11 = vector.load %arg1[%c0_15, %c0_16, %c0_17] : memref<1x4x256xf32, #tpu.memory_space<vmem>>, vector<1x4x256xf32>
    %12 = vector.shape_cast %11 : vector<1x4x256xf32> to vector<4x256xf32>
    %c0_18 = arith.constant 0 : index
    %c128 = arith.constant 128 : index
    %13 = vector.load %arg8[%c0_18, %c128] : memref<4x512xf32, #tpu.memory_space<vmem>>, vector<4x256xf32>
    tpu.vector_store %arg8[%c0_18, %c128], %12 {strides = array<i32>} : memref<4x512xf32, #tpu.memory_space<vmem>>, vector<4x256xf32>,
    %14 = tpu.iota {dimensions = array<i32: 1>} : vector<4x256xi32>
    %c0_i32 = arith.constant 0 : i32
    %15 = vector.broadcast %c0_i32 : i32 to vector<4x256xi32>
    %16 = arith.addi %14, %15 : vector<4x256xi32>
    %c15_i32 = arith.constant 15 : i32
    %17 = vector.broadcast %c15_i32 : i32 to vector<4x256xi32>
    %18 = arith.andi %16, %17 : vector<4x256xi32>
    %c0_i32_19 = arith.constant 0 : i32
    %19 = vector.broadcast %c0_i32_19 : i32 to vector<4x256xi32>
    %20 = arith.cmpi eq, %18, %19 : vector<4x256xi32>
    %c15_i32_20 = arith.constant 15 : i32
    %21 = vector.broadcast %c15_i32_20 : i32 to vector<4x256xi32>
    %22 = arith.cmpi eq, %18, %21 : vector<4x256xi32>
    %c0_21 = arith.constant 0 : index
    %c111_22 = arith.constant 111 : index
    %23 = vector.load %arg8[%c0_21, %c111_22] : memref<4x512xf32, #tpu.memory_space<vmem>>, vector<4x256xf32>
    %cst_23 = arith.constant 0.000000e+00 : f32
    %24 = vector.broadcast %cst_23 : f32 to vector<4x256xf32>
    %25 = arith.select %20, %24, %23 : vector<4x256xi1>, vector<4x256xf32>
    %c0_24 = arith.constant 0 : index
    %c0_25 = arith.constant 0 : index
    %26 = vector.load %arg10[%c0_24, %c0_25] : memref<36x256xf32, #tpu.memory_space<vmem>>, vector<4x256xf32>
    tpu.vector_store %arg10[%c0_24, %c0_25], %25 {strides = array<i32>} : memref<36x256xf32, #tpu.memory_space<vmem>>, vector<4x256xf32>,
    %c0_26 = arith.constant 0 : index
    %c112 = arith.constant 112 : index
    %27 = vector.load %arg8[%c0_26, %c112] : memref<4x512xf32, #tpu.memory_space<vmem>>, vector<4x256xf32>
    %c4 = arith.constant 4 : index
    %c0_27 = arith.constant 0 : index
    %28 = vector.load %arg10[%c4, %c0_27] : memref<36x256xf32, #tpu.memory_space<vmem>>, vector<4x256xf32>
    tpu.vector_store %arg10[%c4, %c0_27], %27 {strides = array<i32>} : memref<36x256xf32, #tpu.memory_space<vmem>>, vector<4x256xf32>,
    %c0_28 = arith.constant 0 : index
    %c113 = arith.constant 113 : index
    %29 = vector.load %arg8[%c0_28, %c113] : memref<4x512xf32, #tpu.memory_space<vmem>>, vector<4x256xf32>
    %cst_29 = arith.constant 0.000000e+00 : f32
    %30 = vector.broadcast %cst_29 : f32 to vector<4x256xf32>
    %31 = arith.select %22, %30, %29 : vector<4x256xi1>, vector<4x256xf32>
    %c8 = arith.constant 8 : index
    %c0_30 = arith.constant 0 : index
    %32 = vector.load %arg10[%c8, %c0_30] : memref<36x256xf32, #tpu.memory_space<vmem>>, vector<4x256xf32>
    tpu.vector_store %arg10[%c8, %c0_30], %31 {strides = array<i32>} : memref<36x256xf32, #tpu.memory_space<vmem>>, vector<4x256xf32>,
    %c0_31 = arith.constant 0 : index
    %c127 = arith.constant 127 : index
    %33 = vector.load %arg8[%c0_31, %c127] : memref<4x512xf32, #tpu.memory_space<vmem>>, vector<4x256xf32>
    %cst_32 = arith.constant 0.000000e+00 : f32
    %34 = vector.broadcast %cst_32 : f32 to vector<4x256xf32>
    %35 = arith.select %20, %34, %33 : vector<4x256xi1>, vector<4x256xf32>
    %c12 = arith.constant 12 : index
    %c0_33 = arith.constant 0 : index
    %36 = vector.load %arg10[%c12, %c0_33] : memref<36x256xf32, #tpu.memory_space<vmem>>, vector<4x256xf32>
    tpu.vector_store %arg10[%c12, %c0_33], %35 {strides = array<i32>} : memref<36x256xf32, #tpu.memory_space<vmem>>, vector<4x256xf32>,
    %c0_34 = arith.constant 0 : index
    %c128_35 = arith.constant 128 : index
    %37 = vector.load %arg8[%c0_34, %c128_35] : memref<4x512xf32, #tpu.memory_space<vmem>>, vector<4x256xf32>
    %c16 = arith.constant 16 : index
    %c0_36 = arith.constant 0 : index
    %38 = vector.load %arg10[%c16, %c0_36] : memref<36x256xf32, #tpu.memory_space<vmem>>, vector<4x256xf32>
    tpu.vector_store %arg10[%c16, %c0_36], %37 {strides = array<i32>} : memref<36x256xf32, #tpu.memory_space<vmem>>, vector<4x256xf32>,
    %c0_37 = arith.constant 0 : index
    %c129 = arith.constant 129 : index
    %39 = vector.load %arg8[%c0_37, %c129] : memref<4x512xf32, #tpu.memory_space<vmem>>, vector<4x256xf32>
    %cst_38 = arith.constant 0.000000e+00 : f32
    %40 = vector.broadcast %cst_38 : f32 to vector<4x256xf32>
    %41 = arith.select %22, %40, %39 : vector<4x256xi1>, vector<4x256xf32>
    %c20 = arith.constant 20 : index
    %c0_39 = arith.constant 0 : index
    %42 = vector.load %arg10[%c20, %c0_39] : memref<36x256xf32, #tpu.memory_space<vmem>>, vector<4x256xf32>
    tpu.vector_store %arg10[%c20, %c0_39], %41 {strides = array<i32>} : memref<36x256xf32, #tpu.memory_space<vmem>>, vector<4x256xf32>,
    %c0_40 = arith.constant 0 : index
    %c143 = arith.constant 143 : index
    %43 = vector.load %arg8[%c0_40, %c143] : memref<4x512xf32, #tpu.memory_space<vmem>>, vector<4x256xf32>
    %cst_41 = arith.constant 0.000000e+00 : f32
    %44 = vector.broadcast %cst_41 : f32 to vector<4x256xf32>
    %45 = arith.select %20, %44, %43 : vector<4x256xi1>, vector<4x256xf32>
    %c24 = arith.constant 24 : index
    %c0_42 = arith.constant 0 : index
    %46 = vector.load %arg10[%c24, %c0_42] : memref<36x256xf32, #tpu.memory_space<vmem>>, vector<4x256xf32>
    tpu.vector_store %arg10[%c24, %c0_42], %45 {strides = array<i32>} : memref<36x256xf32, #tpu.memory_space<vmem>>, vector<4x256xf32>,
    %c0_43 = arith.constant 0 : index
    %c144 = arith.constant 144 : index
    %47 = vector.load %arg8[%c0_43, %c144] : memref<4x512xf32, #tpu.memory_space<vmem>>, vector<4x256xf32>
    %c28 = arith.constant 28 : index
    %c0_44 = arith.constant 0 : index
    %48 = vector.load %arg10[%c28, %c0_44] : memref<36x256xf32, #tpu.memory_space<vmem>>, vector<4x256xf32>
    tpu.vector_store %arg10[%c28, %c0_44], %47 {strides = array<i32>} : memref<36x256xf32, #tpu.memory_space<vmem>>, vector<4x256xf32>,
    %c0_45 = arith.constant 0 : index
    %c145 = arith.constant 145 : index
    %49 = vector.load %arg8[%c0_45, %c145] : memref<4x512xf32, #tpu.memory_space<vmem>>, vector<4x256xf32>
    %cst_46 = arith.constant 0.000000e+00 : f32
    %50 = vector.broadcast %cst_46 : f32 to vector<4x256xf32>
    %51 = arith.select %22, %50, %49 : vector<4x256xi1>, vector<4x256xf32>
    %c32 = arith.constant 32 : index
    %c0_47 = arith.constant 0 : index
    %52 = vector.load %arg10[%c32, %c0_47] : memref<36x256xf32, #tpu.memory_space<vmem>>, vector<4x256xf32>
    tpu.vector_store %arg10[%c32, %c0_47], %51 {strides = array<i32>} : memref<36x256xf32, #tpu.memory_space<vmem>>, vector<4x256xf32>,
    %c0_48 = arith.constant 0 : index
    %c0_49 = arith.constant 0 : index
    %53 = vector.load %arg10[%c0_48, %c0_49] : memref<36x256xf32, #tpu.memory_space<vmem>>, vector<36x256xf32>
    %cst_50 = arith.constant dense<0.000000e+00> : vector<4x256xf32>
    %54 = tpu.matmul %1, %53, %cst_50 {dimension_numbers = #tpu.dot_dimension_numbers<[1], [0], [0], [1], [0, 0, 1, 1], [], []>} : vector<4x36xf32>, vector<36x256xf32>, vector<4x256xf32> -> vector<4x256xf32>
    %55 = vector.broadcast %3 : vector<4x1xf32> to vector<4x256xf32>
    %56 = arith.addf %54, %55 : vector<4x256xf32>
    %cst_51 = arith.constant 0.000000e+00 : f32
    %57 = vector.broadcast %cst_51 : f32 to vector<4x256xf32>
    %58 = arith.cmpf ogt, %56, %57 : vector<4x256xf32>
    %59 = vector.broadcast %0 : f32 to vector<4x256xf32>
    %60 = arith.mulf %59, %56 : vector<4x256xf32>
    %61 = arith.select %58, %56, %60 : vector<4x256xi1>, vector<4x256xf32>
    %c0_52 = arith.constant 0 : index
    %c128_53 = arith.constant 128 : index
    %62 = vector.load %arg9[%c0_52, %c128_53] : memref<4x512xf32, #tpu.memory_space<vmem>>, vector<4x256xf32>
    tpu.vector_store %arg9[%c0_52, %c128_53], %61 {strides = array<i32>} : memref<4x512xf32, #tpu.memory_space<vmem>>, vector<4x256xf32>,
    %63 = tpu.iota {dimensions = array<i32: 1>} : vector<4x256xi32>
    %c0_i32_54 = arith.constant 0 : i32
    %64 = vector.broadcast %c0_i32_54 : i32 to vector<4x256xi32>
    %65 = arith.addi %63, %64 : vector<4x256xi32>
    %c15_i32_55 = arith.constant 15 : i32
    %66 = vector.broadcast %c15_i32_55 : i32 to vector<4x256xi32>
    %67 = arith.andi %65, %66 : vector<4x256xi32>
    %c0_i32_56 = arith.constant 0 : i32
    %68 = vector.broadcast %c0_i32_56 : i32 to vector<4x256xi32>
    %69 = arith.cmpi eq, %67, %68 : vector<4x256xi32>
    %c15_i32_57 = arith.constant 15 : i32
    %70 = vector.broadcast %c15_i32_57 : i32 to vector<4x256xi32>
    %71 = arith.cmpi eq, %67, %70 : vector<4x256xi32>
    %c0_58 = arith.constant 0 : index
    %c111_59 = arith.constant 111 : index
    %72 = vector.load %arg9[%c0_58, %c111_59] : memref<4x512xf32, #tpu.memory_space<vmem>>, vector<4x256xf32>
    %cst_60 = arith.constant 0.000000e+00 : f32
    %73 = vector.broadcast %cst_60 : f32 to vector<4x256xf32>
    %74 = arith.select %69, %73, %72 : vector<4x256xi1>, vector<4x256xf32>
    %c0_61 = arith.constant 0 : index
    %c0_62 = arith.constant 0 : index
    %75 = vector.load %arg10[%c0_61, %c0_62] : memref<36x256xf32, #tpu.memory_space<vmem>>, vector<4x256xf32>
    tpu.vector_store %arg10[%c0_61, %c0_62], %74 {strides = array<i32>} : memref<36x256xf32, #tpu.memory_space<vmem>>, vector<4x256xf32>,
    %c0_63 = arith.constant 0 : index
    %c112_64 = arith.constant 112 : index
    %76 = vector.load %arg9[%c0_63, %c112_64] : memref<4x512xf32, #tpu.memory_space<vmem>>, vector<4x256xf32>
    %c4_65 = arith.constant 4 : index
    %c0_66 = arith.constant 0 : index
    %77 = vector.load %arg10[%c4_65, %c0_66] : memref<36x256xf32, #tpu.memory_space<vmem>>, vector<4x256xf32>
    tpu.vector_store %arg10[%c4_65, %c0_66], %76 {strides = array<i32>} : memref<36x256xf32, #tpu.memory_space<vmem>>, vector<4x256xf32>,
    %c0_67 = arith.constant 0 : index
    %c113_68 = arith.constant 113 : index
    %78 = vector.load %arg9[%c0_67, %c113_68] : memref<4x512xf32, #tpu.memory_space<vmem>>, vector<4x256xf32>
    %cst_69 = arith.constant 0.000000e+00 : f32
    %79 = vector.broadcast %cst_69 : f32 to vector<4x256xf32>
    %80 = arith.select %71, %79, %78 : vector<4x256xi1>, vector<4x256xf32>
    %c8_70 = arith.constant 8 : index
    %c0_71 = arith.constant 0 : index
    %81 = vector.load %arg10[%c8_70, %c0_71] : memref<36x256xf32, #tpu.memory_space<vmem>>, vector<4x256xf32>
    tpu.vector_store %arg10[%c8_70, %c0_71], %80 {strides = array<i32>} : memref<36x256xf32, #tpu.memory_space<vmem>>, vector<4x256xf32>,
    %c0_72 = arith.constant 0 : index
    %c127_73 = arith.constant 127 : index
    %82 = vector.load %arg9[%c0_72, %c127_73] : memref<4x512xf32, #tpu.memory_space<vmem>>, vector<4x256xf32>
    %cst_74 = arith.constant 0.000000e+00 : f32
    %83 = vector.broadcast %cst_74 : f32 to vector<4x256xf32>
    %84 = arith.select %69, %83, %82 : vector<4x256xi1>, vector<4x256xf32>
    %c12_75 = arith.constant 12 : index
    %c0_76 = arith.constant 0 : index
    %85 = vector.load %arg10[%c12_75, %c0_76] : memref<36x256xf32, #tpu.memory_space<vmem>>, vector<4x256xf32>
    tpu.vector_store %arg10[%c12_75, %c0_76], %84 {strides = array<i32>} : memref<36x256xf32, #tpu.memory_space<vmem>>, vector<4x256xf32>,
    %c0_77 = arith.constant 0 : index
    %c128_78 = arith.constant 128 : index
    %86 = vector.load %arg9[%c0_77, %c128_78] : memref<4x512xf32, #tpu.memory_space<vmem>>, vector<4x256xf32>
    %c16_79 = arith.constant 16 : index
    %c0_80 = arith.constant 0 : index
    %87 = vector.load %arg10[%c16_79, %c0_80] : memref<36x256xf32, #tpu.memory_space<vmem>>, vector<4x256xf32>
    tpu.vector_store %arg10[%c16_79, %c0_80], %86 {strides = array<i32>} : memref<36x256xf32, #tpu.memory_space<vmem>>, vector<4x256xf32>,
    %c0_81 = arith.constant 0 : index
    %c129_82 = arith.constant 129 : index
    %88 = vector.load %arg9[%c0_81, %c129_82] : memref<4x512xf32, #tpu.memory_space<vmem>>, vector<4x256xf32>
    %cst_83 = arith.constant 0.000000e+00 : f32
    %89 = vector.broadcast %cst_83 : f32 to vector<4x256xf32>
    %90 = arith.select %71, %89, %88 : vector<4x256xi1>, vector<4x256xf32>
    %c20_84 = arith.constant 20 : index
    %c0_85 = arith.constant 0 : index
    %91 = vector.load %arg10[%c20_84, %c0_85] : memref<36x256xf32, #tpu.memory_space<vmem>>, vector<4x256xf32>
    tpu.vector_store %arg10[%c20_84, %c0_85], %90 {strides = array<i32>} : memref<36x256xf32, #tpu.memory_space<vmem>>, vector<4x256xf32>,
    %c0_86 = arith.constant 0 : index
    %c143_87 = arith.constant 143 : index
    %92 = vector.load %arg9[%c0_86, %c143_87] : memref<4x512xf32, #tpu.memory_space<vmem>>, vector<4x256xf32>
    %cst_88 = arith.constant 0.000000e+00 : f32
    %93 = vector.broadcast %cst_88 : f32 to vector<4x256xf32>
    %94 = arith.select %69, %93, %92 : vector<4x256xi1>, vector<4x256xf32>
    %c24_89 = arith.constant 24 : index
    %c0_90 = arith.constant 0 : index
    %95 = vector.load %arg10[%c24_89, %c0_90] : memref<36x256xf32, #tpu.memory_space<vmem>>, vector<4x256xf32>
    tpu.vector_store %arg10[%c24_89, %c0_90], %94 {strides = array<i32>} : memref<36x256xf32, #tpu.memory_space<vmem>>, vector<4x256xf32>,
    %c0_91 = arith.constant 0 : index
    %c144_92 = arith.constant 144 : index
    %96 = vector.load %arg9[%c0_91, %c144_92] : memref<4x512xf32, #tpu.memory_space<vmem>>, vector<4x256xf32>
    %c28_93 = arith.constant 28 : index
    %c0_94 = arith.constant 0 : index
    %97 = vector.load %arg10[%c28_93, %c0_94] : memref<36x256xf32, #tpu.memory_space<vmem>>, vector<4x256xf32>
    tpu.vector_store %arg10[%c28_93, %c0_94], %96 {strides = array<i32>} : memref<36x256xf32, #tpu.memory_space<vmem>>, vector<4x256xf32>,
    %c0_95 = arith.constant 0 : index
    %c145_96 = arith.constant 145 : index
    %98 = vector.load %arg9[%c0_95, %c145_96] : memref<4x512xf32, #tpu.memory_space<vmem>>, vector<4x256xf32>
    %cst_97 = arith.constant 0.000000e+00 : f32
    %99 = vector.broadcast %cst_97 : f32 to vector<4x256xf32>
    %100 = arith.select %71, %99, %98 : vector<4x256xi1>, vector<4x256xf32>
    %c32_98 = arith.constant 32 : index
    %c0_99 = arith.constant 0 : index
    %101 = vector.load %arg10[%c32_98, %c0_99] : memref<36x256xf32, #tpu.memory_space<vmem>>, vector<4x256xf32>
    tpu.vector_store %arg10[%c32_98, %c0_99], %100 {strides = array<i32>} : memref<36x256xf32, #tpu.memory_space<vmem>>, vector<4x256xf32>,
    %c0_100 = arith.constant 0 : index
    %c0_101 = arith.constant 0 : index
    %102 = vector.load %arg10[%c0_100, %c0_101] : memref<36x256xf32, #tpu.memory_space<vmem>>, vector<36x256xf32>
    %cst_102 = arith.constant dense<0.000000e+00> : vector<4x256xf32>
    %103 = tpu.matmul %2, %102, %cst_102 {dimension_numbers = #tpu.dot_dimension_numbers<[1], [0], [0], [1], [0, 0, 1, 1], [], []>} : vector<4x36xf32>, vector<36x256xf32>, vector<4x256xf32> -> vector<4x256xf32>
    %104 = vector.broadcast %4 : vector<4x1xf32> to vector<4x256xf32>
    %105 = arith.addf %103, %104 : vector<4x256xf32>
    %c0_103 = arith.constant 0 : index
    %c0_104 = arith.constant 0 : index
    %c0_105 = arith.constant 0 : index
    %106 = vector.load %arg1[%c0_103, %c0_104, %c0_105] : memref<1x4x256xf32, #tpu.memory_space<vmem>>, vector<1x4x256xf32>
    %107 = vector.shape_cast %106 : vector<1x4x256xf32> to vector<4x256xf32>
    %108 = arith.addf %105, %107 : vector<4x256xf32>
    %c0_106 = arith.constant 0 : index
    %c0_107 = arith.constant 0 : index
    %c0_108 = arith.constant 0 : index
    %109 = vector.load %arg7[%c0_106, %c0_107, %c0_108] : memref<1x4x256xf32, #tpu.memory_space<vmem>>, vector<1x4x256xf32>
    %110 = vector.shape_cast %109 : vector<1x4x256xf32> to vector<4x256xf32>
    %111 = vector.shape_cast %108 : vector<4x256xf32> to vector<1x4x256xf32>
    tpu.vector_store %arg7[%c0_106, %c0_107, %c0_108], %111 {strides = array<i32>} : memref<1x4x256xf32, #tpu.memory_space<vmem>>, vector<1x4x256xf32>,
    return
  }
  func.func @transform_0(%arg0: i32) -> (i32, i32, i32) {
    %c0_i32 = arith.constant 0 : i32
    %c0_i32_0 = arith.constant 0 : i32
    %c0_i32_1 = arith.constant 0 : i32
    return %arg0, %c0_i32, %c0_i32_0 : i32, i32, i32
  }
  func.func @transform_1(%arg0: i32) -> (i32, i32) {
    %c0_i32 = arith.constant 0 : i32
    %c0_i32_0 = arith.constant 0 : i32
    %c0_i32_1 = arith.constant 0 : i32
    return %c0_i32, %c0_i32_0 : i32, i32
  }
  func.func @transform_2(%arg0: i32) -> (i32, i32) {
    %c0_i32 = arith.constant 0 : i32
    %c0_i32_0 = arith.constant 0 : i32
    %c0_i32_1 = arith.constant 0 : i32
    return %c0_i32, %c0_i32_0 : i32, i32
  }
  func.func @transform_3(%arg0: i32) -> i32 {
    %c0_i32 = arith.constant 0 : i32
    %c0_i32_0 = arith.constant 0 : i32
    return %c0_i32 : i32
  }
  func.func @transform_4(%arg0: i32) -> (i32, i32) {
    %c0_i32 = arith.constant 0 : i32
    %c0_i32_0 = arith.constant 0 : i32
    %c0_i32_1 = arith.constant 0 : i32
    return %c0_i32, %c0_i32_0 : i32, i32
  }
  func.func @transform_5(%arg0: i32) -> (i32, i32) {
    %c0_i32 = arith.constant 0 : i32
    %c0_i32_0 = arith.constant 0 : i32
    %c0_i32_1 = arith.constant 0 : i32
    return %c0_i32, %c0_i32_0 : i32, i32
  }
  func.func @transform_6(%arg0: i32) -> (i32, i32, i32) {
    %c0_i32 = arith.constant 0 : i32
    %c0_i32_0 = arith.constant 0 : i32
    %c0_i32_1 = arith.constant 0 : i32
    return %arg0, %c0_i32, %c0_i32_0 : i32, i32, i32
  }
}

</mosaic_0001>

<llo_original>
// kernel: tpu_custom_call.1
$region0: #{tpu_custom_call.1}
  #allocation0 [shape = 'u32[]', space=smem, size = 0x4, offset = 0x4, fixed_abs, tag = 'smem constant byte address 0x4 - core index']
  #allocation1 [shape = 'u32[144,128]{1,0:T(1,128)}', space=vmem, size = 0x12000, scoped, tag = 'internal scratch']
  #allocation2 [shape = 'f32[4,512]{1,0:T(4,128)}', space=vmem, size = 0x2000, scoped, tag = 'scratch operand']
  #allocation3 [shape = 'f32[4,512]{1,0:T(4,128)}', space=vmem, size = 0x2000, scoped, tag = 'scratch operand']
  #allocation4 [shape = 'f32[36,256]{1,0:T(8,128)}', space=vmem, size = 0xa000, scoped, tag = 'scratch operand']
  #allocation5 [shape = 'f32[1]{0:T(128)S(6)}', space=smem, size = 0x200, scoped, tag = 'scoped memory for tpu_custom_call.1']
  %s0 = inlined_call_operand.hbm [shape: f32[2,4,256], index: 0, kind: input, shape index: {}]
  %s1 = inlined_call_operand.vmem [shape: f32[4,36], index: 1, kind: input, shape index: {}]
  %s2 = inlined_call_operand.vmem [shape: f32[4,1], index: 2, kind: input, shape index: {}]
  %s3 = inlined_call_operand.<no memory space> [shape: f32[1], index: 3, kind: input, shape index: {}]
  %s4 = inlined_call_operand.vmem [shape: f32[4,36], index: 4, kind: input, shape index: {}]
  %s5 = inlined_call_operand.vmem [shape: f32[4,1], index: 5, kind: input, shape index: {}]
  %s6 = inlined_call_operand.hbm [shape: f32[2,4,256], index: 6, kind: output, shape index: {}]
  %s7 = sld [smem:[#allocation0]]
  $region61: #{tpu_custom_call.1} parent=0
    _
  %s9 = ssub.s32 1, %s7
  %s10 = scalar_select 0, %s9, %s7
  %11 = sst [smem:[#allocation5]] %s3
  $region1: #{tpu_custom_call.1} parent=0
    #allocation6 [shape = 'u8[8192]{0}', space=vmem, size = 0x2000, scoped, tag = 'input window, operand 0']
    #allocation7 [shape = 's32[2]{0}', space=sflag, size = 0x8, scoped, tag = 'scoped memory for tpu_custom_call.1']
    #allocation8 [shape = 's32[2]{0}', space=sflag, size = 0x8, scoped, tag = 'scoped memory for tpu_custom_call.1']
    #allocation9 [shape = 'u8[8192]{0}', space=vmem, size = 0x2000, scoped, tag = 'output window, operand 0']
    %12 = vsyncpa [#allocation7], 0
    %s13 = scalar_lea.sflag [#allocation7], 1
    %14 = vsyncpa %s13, 0
    %15 = vsyncpa [#allocation8], 0
    %s16 = scalar_lea.sflag [#allocation8], 1
    %17 = vsyncpa %s16, 0
    loop: start=0, step=1, limit=4
    $region2: #{tpu_custom_call.1} parent=1 // loop_pre_header
      _
    $region3: #{tpu_custom_call.1} parent=1 // loop_header
      %s19 = sphi 0, %s23
      %p20 = scmp.ge.s32.totalorder %s19, 4
      %s29 = sphi 0, %s31
      %s32 = sphi 0, %s29
      %s33 = sphi 0, %s32
      %s49 = sphi 0, %s33
      %s53 = sphi 0, %s53
      %s55 = sphi 0, %s53
      %s56 = sphi 0, %s55
      %s70 = sphi 0, %s56
      %s74 = sphi 0, %s74
      %s76 = sphi 0, %s74
      %s77 = sphi 0, %s76
      %s91 = sphi 0, %s77
      %s95 = sphi 0, %s95
      %s97 = sphi 0, %s95
      %s98 = sphi 0, %s97
      %s112 = sphi 0, %s98
      %s116 = sphi 0, %s116
      %s118 = sphi 0, %s116
      %s119 = sphi 0, %s118
      %s133 = sphi 0, %s119
      %s137 = sphi 0, %s137
      %s139 = sphi 0, %s137
      %s140 = sphi 0, %s139
      %s154 = sphi 0, %s140
      %s160 = sphi 0, %s162
      %s163 = sphi 0, %s160
      %s164 = sphi 0, %s163
      %s180 = sphi 0, %s164
    $region4: #{tpu_custom_call.1} parent=1 // loop_header_branch
      %22 = sbr.rel (%p20) target = $region8
    $region5: #{tpu_custom_call.1} parent=1 // loop_body
      %s24 = ssub.s32 %s19, 1
      %s25 = ssub.s32 %s19, 2
      %s26 = sadd.s32 %s19, 1
      %s27 = ssub.s32 %s19, %s26
      %p28 = scmp.eq.s32.totalorder %s27, 0
      %s30 = sadd.s32 %s29, 1
      %s31 = scalar_select %p28, %s29, %s30
      %p34 = pneg %p28
      %p35 = scmp.eq.s32.totalorder %s19, 1
      %p36 = por %p34, %p35
      %p37 = scmp.ne.s32.totalorder %s29, %s32
      %p38 = scmp.eq.s32.totalorder %s19, 0
      %p39 = por %p37, %p38
      %p40 = scmp.ne.s32.totalorder %s29, %s32
      %p41 = scmp.eq.s32.totalorder %s24, 1
      %p42 = por %p40, %p41
      %p43 = scmp.ne.s32.totalorder %s32, %s33
      %p44 = scmp.eq.s32.totalorder %s24, 0
      %p45 = por %p43, %p44
      %p46 = scmp.ne.s32.totalorder %s32, %s33
      %p47 = scmp.eq.s32.totalorder %s25, 1
      %p48 = por %p46, %p47
      %p50 = scmp.ne.s32.totalorder %s33, %s49
      %p51 = scmp.eq.s32.totalorder %s25, 0
      %p52 = por %p50, %p51
      %s54 = sadd.s32 %s53, 1
      %p57 = scmp.eq.s32.totalorder %s19, 1
      %p58 = scmp.ne.s32.totalorder %s53, %s55
      %p59 = scmp.eq.s32.totalorder %s19, 0
      %p60 = por %p58, %p59
      %p61 = scmp.ne.s32.totalorder %s53, %s55
      %p62 = scmp.eq.s32.totalorder %s24, 1
      %p63 = por %p61, %p62
      %p64 = scmp.ne.s32.totalorder %s55, %s56
      %p65 = scmp.eq.s32.totalorder %s24, 0
      %p66 = por %p64, %p65
      %p67 = scmp.ne.s32.totalorder %s55, %s56
      %p68 = scmp.eq.s32.totalorder %s25, 1
      %p69 = por %p67, %p68
      %p71 = scmp.ne.s32.totalorder %s56, %s70
      %p72 = scmp.eq.s32.totalorder %s25, 0
      %p73 = por %p71, %p72
      %s75 = sadd.s32 %s74, 1
      %p78 = scmp.eq.s32.totalorder %s19, 1
      %p79 = scmp.ne.s32.totalorder %s74, %s76
      %p80 = scmp.eq.s32.totalorder %s19, 0
      %p81 = por %p79, %p80
      %p82 = scmp.ne.s32.totalorder %s74, %s76
      %p83 = scmp.eq.s32.totalorder %s24, 1
      %p84 = por %p82, %p83
      %p85 = scmp.ne.s32.totalorder %s76, %s77
      %p86 = scmp.eq.s32.totalorder %s24, 0
      %p87 = por %p85, %p86
      %p88 = scmp.ne.s32.totalorder %s76, %s77
      %p89 = scmp.eq.s32.totalorder %s25, 1
      %p90 = por %p88, %p89
      %p92 = scmp.ne.s32.totalorder %s77, %s91
      %p93 = scmp.eq.s32.totalorder %s25, 0
      %p94 = por %p92, %p93
      %s96 = sadd.s32 %s95, 1
      %p99 = scmp.eq.s32.totalorder %s19, 1
      %p100 = scmp.ne.s32.totalorder %s95, %s97
      %p101 = scmp.eq.s32.totalorder %s19, 0
      %p102 = por %p100, %p101
      %p103 = scmp.ne.s32.totalorder %s95, %s97
      %p104 = scmp.eq.s32.totalorder %s24, 1
      %p105 = por %p103, %p104
      %p106 = scmp.ne.s32.totalorder %s97, %s98
      %p107 = scmp.eq.s32.totalorder %s24, 0
      %p108 = por %p106, %p107
      %p109 = scmp.ne.s32.totalorder %s97, %s98
      %p110 = scmp.eq.s32.totalorder %s25, 1
      %p111 = por %p109, %p110
      %p113 = scmp.ne.s32.totalorder %s98, %s112
      %p114 = scmp.eq.s32.totalorder %s25, 0
      %p115 = por %p113, %p114
      %s117 = sadd.s32 %s116, 1
      %p120 = scmp.eq.s32.totalorder %s19, 1
      %p121 = scmp.ne.s32.totalorder %s116, %s118
      %p122 = scmp.eq.s32.totalorder %s19, 0
      %p123 = por %p121, %p122
      %p124 = scmp.ne.s32.totalorder %s116, %s118
      %p125 = scmp.eq.s32.totalorder %s24, 1
      %p126 = por %p124, %p125
      %p127 = scmp.ne.s32.totalorder %s118, %s119
      %p128 = scmp.eq.s32.totalorder %s24, 0
      %p129 = por %p127, %p128
      %p130 = scmp.ne.s32.totalorder %s118, %s119
      %p131 = scmp.eq.s32.totalorder %s25, 1
      %p132 = por %p130, %p131
      %p134 = scmp.ne.s32.totalorder %s119, %s133
      %p135 = scmp.eq.s32.totalorder %s25, 0
      %p136 = por %p134, %p135
      %s138 = sadd.s32 %s137, 1
      %p141 = scmp.eq.s32.totalorder %s19, 1
      %p142 = scmp.ne.s32.totalorder %s137, %s139
      %p143 = scmp.eq.s32.totalorder %s19, 0
      %p144 = por %p142, %p143
      %p145 = scmp.ne.s32.totalorder %s137, %s139
      %p146 = scmp.eq.s32.totalorder %s24, 1
      %p147 = por %p145, %p146
      %p148 = scmp.ne.s32.totalorder %s139, %s140
      %p149 = scmp.eq.s32.totalorder %s24, 0
      %p150 = por %p148, %p149
      %p151 = scmp.ne.s32.totalorder %s139, %s140
      %p152 = scmp.eq.s32.totalorder %s25, 1
      %p153 = por %p151, %p152
      %p155 = scmp.ne.s32.totalorder %s140, %s154
      %p156 = scmp.eq.s32.totalorder %s25, 0
      %p157 = por %p155, %p156
      %s158 = ssub.s32 %s19, %s26
      %p159 = scmp.eq.s32.totalorder %s158, 0
      %s161 = sadd.s32 %s160, 1
      %s162 = scalar_select %p159, %s160, %s161
      %p165 = pneg %p159
      %p166 = scmp.eq.s32.totalorder %s19, 1
      %p167 = por %p165, %p166
      %p168 = scmp.ne.s32.totalorder %s160, %s163
      %p169 = scmp.eq.s32.totalorder %s19, 0
      %p170 = por %p168, %p169
      %p171 = scmp.ne.s32.totalorder %s160, %s163
      %p172 = scmp.eq.s32.totalorder %s24, 1
      %p173 = por %p171, %p172
      %p174 = scmp.ne.s32.totalorder %s163, %s164
      %p175 = scmp.eq.s32.totalorder %s24, 0
      %p176 = por %p174, %p175
      %p177 = scmp.ne.s32.totalorder %s163, %s164
      %p178 = scmp.eq.s32.totalorder %s25, 1
      %p179 = por %p177, %p178
      %p181 = scmp.ne.s32.totalorder %s164, %s180
      %p182 = scmp.eq.s32.totalorder %s25, 0
      %p183 = por %p181, %p182
      %p184 = scmp.le.s32.totalorder 1, %s19
      %p185 = scmp.lt.s32.totalorder %s19, 3
      %p186 = pnand %p184, %p185
      %p187 = pneg %p186
      // Predicated region
      $region9: #{tpu_custom_call.1} parent=5 // pred_check
        _
      $region10: #{tpu_custom_call.1} parent=5 // pred_check_branch
        %189 = sbr.rel (%p186) target = $region12
      $region11: #{tpu_custom_call.1} parent=5 // pred_region
        %s190 = ssub.s32 %s19, 1
        // Predicated region
        $region13: #{tpu_custom_call.1} parent=11 // pred_check
          %p191 = pneg %p66
        $region14: #{tpu_custom_call.1} parent=11 // pred_check_branch
          %193 = sbr.rel (%p191) target = $region16
        $region15: #{tpu_custom_call.1} parent=11 // pred_region
          _
        $region16: #{tpu_custom_call.1} parent=11 // pred_fallthru
          _
        // Predicated region
        $region17: #{tpu_custom_call.1} parent=11 // pred_check
          %p194 = pneg %p87
        $region18: #{tpu_custom_call.1} parent=11 // pred_check_branch
          %196 = sbr.rel (%p194) target = $region20
        $region19: #{tpu_custom_call.1} parent=11 // pred_region
          _
        $region20: #{tpu_custom_call.1} parent=11 // pred_fallthru
          _
        // Predicated region
        $region21: #{tpu_custom_call.1} parent=11 // pred_check
          %p197 = pneg %p108
        $region22: #{tpu_custom_call.1} parent=11 // pred_check_branch
          %199 = sbr.rel (%p197) target = $region24
        $region23: #{tpu_custom_call.1} parent=11 // pred_region
          _
        $region24: #{tpu_custom_call.1} parent=11 // pred_fallthru
          _
        // Predicated region
        $region25: #{tpu_custom_call.1} parent=11 // pred_check
          %p200 = pneg %p129
        $region26: #{tpu_custom_call.1} parent=11 // pred_check_branch
          %202 = sbr.rel (%p200) target = $region28
        $region27: #{tpu_custom_call.1} parent=11 // pred_region
          _
        $region28: #{tpu_custom_call.1} parent=11 // pred_fallthru
          _
        // Predicated region
        $region29: #{tpu_custom_call.1} parent=11 // pred_check
          %p203 = pneg %p150
        $region30: #{tpu_custom_call.1} parent=11 // pred_check_branch
          %205 = sbr.rel (%p203) target = $region32
        $region31: #{tpu_custom_call.1} parent=11 // pred_region
          _
        $region32: #{tpu_custom_call.1} parent=11 // pred_fallthru
          _
      $region12: #{tpu_custom_call.1} parent=5 // pred_fallthru
        _
      %p206 = scmp.lt.s32.totalorder %s19, 2
      // Predicated region
      $region33: #{tpu_custom_call.1} parent=5 // pred_check
        %p207 = pneg %p206
      $region34: #{tpu_custom_call.1} parent=5 // pred_check_branch
        %209 = sbr.rel (%p207) target = $region36
      $region35: #{tpu_custom_call.1} parent=5 // pred_region
        // Predicated region
        $region37: #{tpu_custom_call.1} parent=35 // pred_check
          %p210 = pneg %p39
        $region38: #{tpu_custom_call.1} parent=35 // pred_check_branch
          %212 = sbr.rel (%p210) target = $region40
        $region39: #{tpu_custom_call.1} parent=35 // pred_region
          %s213 = sand.u32 %s29, 1
          %s214 = scalar_lea.sflag [#allocation7], %s213
          %s215 = sand.u32 %s29, 1
          %s216 = smul.addr %s215, 8
          %s217 = scalar_lea.vmem [#allocation6], %s216
          %s219 = ssub.s32 128, 128
          %220 = vsyncadd %s214, %s219
          %s221 = smul.addr %s19, 2
          %s222 = smul.addr %s221, 64
          %s223 = scalar_lea.hbm %s0, %s222
          %s225 = sshll.u32 %s217, 4
          %s226 = int_to_ptr.vmem [resolvable:$true] %s225
          %228 = dma.hbm_to_vmem [thread:$0]  %s223, 128, %s226, %s214
        $region40: #{tpu_custom_call.1} parent=35 // pred_fallthru
          _
      $region36: #{tpu_custom_call.1} parent=5 // pred_fallthru
        _
      %p229 = scmp.le.s32.totalorder 1, %s19
      %p230 = scmp.lt.s32.totalorder %s19, 3
      %p231 = pnand %p229, %p230
      %p232 = pneg %p231
      // Predicated region
      $region41: #{tpu_custom_call.1} parent=5 // pred_check
        _
      $region42: #{tpu_custom_call.1} parent=5 // pred_check_branch
        %234 = sbr.rel (%p231) target = $region44
      $region43: #{tpu_custom_call.1} parent=5 // pred_region
        %s235 = ssub.s32 %s19, 1
        %s236 = sand.u32 %s32, 1
        %s237 = scalar_lea.sflag [#allocation7], %s236
        %s238 = sand.u32 %s32, 1
        %s239 = smul.addr %s238, 8
        %s240 = scalar_lea.vmem [#allocation6], %s239
        // Predicated region
        $region45: #{tpu_custom_call.1} parent=43 // pred_check
          %p241 = pneg %p45
        $region46: #{tpu_custom_call.1} parent=43 // pred_check_branch
          %243 = sbr.rel (%p241) target = $region48
        $region47: #{tpu_custom_call.1} parent=43 // pred_region
          %244 = dma.done %s237, 128
        $region48: #{tpu_custom_call.1} parent=43 // pred_fallthru
          _
        %s245 = sand.u32 %s32, 1
        %s246 = scalar_lea.sflag [#allocation7], %s245
        %s247 = sand.u32 %s32, 1
        %s248 = smul.addr %s247, 8
        %s249 = scalar_lea.vmem [#allocation6], %s248
        %p250 = pneg %p45
        %p251 = pneg %p42
        %p252 = pneg %p66
        %p253 = pneg %p63
        %p254 = pneg %p87
        %p255 = pneg %p84
        %p256 = pneg %p108
        %p257 = pneg %p105
        %p258 = pneg %p129
        %p259 = pneg %p126
        %p260 = pneg %p150
        %p261 = pneg %p147
        %p262 = pneg %p176
        %p263 = pneg %p173
        %s264 = sand.u32 %s163, 1
        %s265 = scalar_lea.sflag [#allocation8], %s264
        %s266 = sand.u32 %s163, 1
        %s267 = smul.addr %s266, 8
        %s268 = scalar_lea.vmem [#allocation9], %s267
        %s269 = sld [smem:[#allocation5]]
        %v270 = vld [vmem:[%s1] sm:$0xf]
        %v271 = vld [vmem:[%s4] sm:$0xf]
        %v272 = vld [vmem:[%s2] sm:$0xf]
        %v273 = vld [vmem:[%s5] sm:$0xf]
        %vm274 = vcmask 1044344
        %275 = vst.msk [vmem:[#allocation2] sm:$0xf] %vm274, 0.0
        %vm276 = vcmask 134144
        %277 = vst.msk [vmem:[#allocation2 + $0xc] sm:$0xf] %vm276, 0.0
        %278 = vst.msk [vmem:[#allocation3] sm:$0xf] %vm274, 0.0
        %279 = vst.msk [vmem:[#allocation3 + $0xc] sm:$0xf] %vm276, 0.0
        %v280 = vld [vmem:[%s240] sm:$0xff]
        %281 = vst [vmem:[#allocation2 + $0x4] sm:$0xff] %v280
        %v282 = vlaneseq
        %v283 = vand.u32 %v282, 127
        %v284 = vadd.s32 %v283, 128
        %v285 = vand.u32 %v283, 15
        %v286 = vand.u32 %v284, 15
        %vm287 = vcmp.eq.s32.totalorder %v285, 0
        %vm288 = vcmp.eq.s32.totalorder %v286, 0
        %vm289 = vcmp.eq.s32.totalorder %v285, 15
        %vm290 = vcmp.eq.s32.totalorder %v286, 15
        %v291 = vld [vmem:[#allocation2] sm:$0xff]
        %v292 = vld [vmem:[#allocation2 + $0x8] sm:$0xf]
        %v295 = vcombine.high %v291, %v291
        %296 = vrot.lane.b32.xlu0 %v291, 17
        %v297 = vpop.permute.xlu0 %296
        %298 = vrot.lane.b32.xlu0 %v295, 17
        %v299 = vpop.permute.xlu0 %298
        %300 = vrot.lane.b32.xlu0 %v292, 17
        %v301 = vpop.permute.xlu0 %300
        %vm302 = vcmask 138240
        %v303 = vsel %vm302, %v297, %v299
        %v304 = vsel %vm302, %v299, %v301
        %v307 = vsel %vm287, 0.0, %v303
        %v308 = vsel %vm288, 0.0, %v304
        %309 = vst [vmem:[#allocation4] sm:$0xf] %v307
        %310 = vst [vmem:[#allocation4 + $0x8] sm:$0xf] %v308
        %v311 = vld [vmem:[#allocation2] sm:$0xff]
        %v312 = vld [vmem:[#allocation2 + $0x8] sm:$0xf]
        %v315 = vcombine.low %v311, %v311
        %v316 = vcombine.low %v312, %v312
        %317 = vrot.lane.b32.xlu0 %v315, 16
        %v318 = vpop.permute.xlu0 %317
        %319 = vrot.lane.b32.xlu0 %v311, 16
        %v320 = vpop.permute.xlu0 %319
        %321 = vrot.lane.b32.xlu0 %v316, 16
        %v322 = vpop.permute.xlu0 %321
        %vm323 = vcmask 130048
        %v324 = vsel %vm323, %v318, %v320
        %v325 = vsel %vm323, %v320, %v322
        %328 = vst [vmem:[#allocation4] sm:$0xf0] %v324
        %329 = vst [vmem:[#allocation4 + $0x8] sm:$0xf0] %v325
        %v330 = vld [vmem:[#allocation2] sm:$0xff]
        %v331 = vld [vmem:[#allocation2 + $0x8] sm:$0xf]
        %v334 = vcombine.high %v330, %v330
        %335 = vrot.lane.b32.xlu0 %v330, 15
        %v336 = vpop.permute.xlu0 %335
        %337 = vrot.lane.b32.xlu0 %v334, 15
        %v338 = vpop.permute.xlu0 %337
        %339 = vrot.lane.b32.xlu0 %v331, 15
        %v340 = vpop.permute.xlu0 %339
        %vm341 = vcmask 121856
        %v342 = vsel %vm341, %v336, %v338
        %v343 = vsel %vm341, %v338, %v340
        %v346 = vsel %vm289, 0.0, %v342
        %v347 = vsel %vm290, 0.0, %v343
        %348 = vst [vmem:[#allocation4 + $0x10] sm:$0xf] %v346
        %349 = vst [vmem:[#allocation4 + $0x18] sm:$0xf] %v347
        %v350 = vld [vmem:[#allocation2] sm:$0xff]
        %v351 = vld [vmem:[#allocation2 + $0x8] sm:$0xf]
        %v354 = vcombine.high %v350, %v350
        %355 = vrot.lane.b32.xlu0 %v350, 1
        %v356 = vpop.permute.xlu0 %355
        %357 = vrot.lane.b32.xlu0 %v354, 1
        %v358 = vpop.permute.xlu0 %357
        %359 = vrot.lane.b32.xlu0 %v351, 1
        %v360 = vpop.permute.xlu0 %359
        %vm361 = vcmask 7168
        %v362 = vsel %vm361, %v356, %v358
        %v363 = vsel %vm361, %v358, %v360
        %v366 = vsel %vm287, 0.0, %v362
        %v367 = vsel %vm288, 0.0, %v363
        %v370 = vrot.slane %v366, 4
        %v371 = vrot.slane %v367, 4
        %374 = vst [vmem:[#allocation4 + $0x10] sm:$0xf0] %v370
        %375 = vst [vmem:[#allocation4 + $0x18] sm:$0xf0] %v371
        %v376 = vld [vmem:[#allocation2 + $0x4] sm:$0xff]
        %v378 = vcombine.high %v376, %v376
        %380 = vst [vmem:[#allocation4 + $0x20] sm:$0xf] %v376
        %381 = vst [vmem:[#allocation4 + $0x28] sm:$0xf] %v378
        %v382 = vld [vmem:[#allocation2 + $0x4] sm:$0xff]
        %v383 = vld [vmem:[#allocation2 + $0xc] sm:$0xf]
        %v386 = vcombine.high %v382, %v382
        %387 = vrot.lane.b32.xlu0 %v382, 127
        %v388 = vpop.permute.xlu0 %387
        %389 = vrot.lane.b32.xlu0 %v386, 127
        %v390 = vpop.permute.xlu0 %389
        %391 = vrot.lane.b32.xlu0 %v383, 127
        %v392 = vpop.permute.xlu0 %391
        %vm393 = vcmask 1039360
        %v394 = vsel %vm393, %v388, %v390
        %v395 = vsel %vm393, %v390, %v392
        %v398 = vsel %vm289, 0.0, %v394
        %v399 = vsel %vm290, 0.0, %v395
        %v402 = vrot.slane %v398, 4
        %v403 = vrot.slane %v399, 4
        %406 = vst [vmem:[#allocation4 + $0x20] sm:$0xf0] %v402
        %407 = vst [vmem:[#allocation4 + $0x28] sm:$0xf0] %v403
        %v408 = vld [vmem:[#allocation2 + $0x4] sm:$0xff]
        %v409 = vld [vmem:[#allocation2 + $0xc] sm:$0xf]
        %v412 = vcombine.high %v408, %v408
        %413 = vrot.lane.b32.xlu0 %v408, 113
        %v414 = vpop.permute.xlu0 %413
        %415 = vrot.lane.b32.xlu0 %v412, 113
        %v416 = vpop.permute.xlu0 %415
        %417 = vrot.lane.b32.xlu0 %v409, 113
        %v418 = vpop.permute.xlu0 %417
        %vm419 = vcmask 924672
        %v420 = vsel %vm419, %v414, %v416
        %v421 = vsel %vm419, %v416, %v418
        %v424 = vsel %vm287, 0.0, %v420
        %v425 = vsel %vm288, 0.0, %v421
        %426 = vst [vmem:[#allocation4 + $0x30] sm:$0xf] %v424
        %427 = vst [vmem:[#allocation4 + $0x38] sm:$0xf] %v425
        %v428 = vld [vmem:[#allocation2 + $0x4] sm:$0xff]
        %v429 = vld [vmem:[#allocation2 + $0xc] sm:$0xf]
        %v432 = vcombine.low %v428, %v428
        %v433 = vcombine.low %v429, %v429
        %434 = vrot.lane.b32.xlu0 %v432, 112
        %v435 = vpop.permute.xlu0 %434
        %436 = vrot.lane.b32.xlu0 %v428, 112
        %v437 = vpop.permute.xlu0 %436
        %438 = vrot.lane.b32.xlu0 %v433, 112
        %v439 = vpop.permute.xlu0 %438
        %vm440 = vcmask 916480
        %v441 = vsel %vm440, %v435, %v437
        %v442 = vsel %vm440, %v437, %v439
        %445 = vst [vmem:[#allocation4 + $0x30] sm:$0xf0] %v441
        %446 = vst [vmem:[#allocation4 + $0x38] sm:$0xf0] %v442
        %v447 = vld [vmem:[#allocation2 + $0x4] sm:$0xff]
        %v448 = vld [vmem:[#allocation2 + $0xc] sm:$0xf]
        %v451 = vcombine.high %v447, %v447
        %452 = vrot.lane.b32.xlu0 %v447, 111
        %v453 = vpop.permute.xlu0 %452
        %454 = vrot.lane.b32.xlu0 %v451, 111
        %v455 = vpop.permute.xlu0 %454
        %456 = vrot.lane.b32.xlu0 %v448, 111
        %v457 = vpop.permute.xlu0 %456
        %vm458 = vcmask 908288
        %v459 = vsel %vm458, %v453, %v455
        %v460 = vsel %vm458, %v455, %v457
        %v463 = vsel %vm289, 0.0, %v459
        %v464 = vsel %vm290, 0.0, %v460
        %465 = vst [vmem:[#allocation4 + $0x40] sm:$0xf] %v463
        %466 = vst [vmem:[#allocation4 + $0x48] sm:$0xf] %v464
        %v467 = vld [vmem:[#allocation4] sm:$0xff]
        %v468 = vld [vmem:[#allocation4 + $0x8] sm:$0xff]
        %v469 = vld [vmem:[#allocation4 + $0x10] sm:$0xff]
        %v470 = vld [vmem:[#allocation4 + $0x18] sm:$0xff]
        %v471 = vld [vmem:[#allocation4 + $0x20] sm:$0xff]
        %v472 = vld [vmem:[#allocation4 + $0x28] sm:$0xff]
        %v473 = vld [vmem:[#allocation4 + $0x30] sm:$0xff]
        %v474 = vld [vmem:[#allocation4 + $0x38] sm:$0xff]
        %v475 = vld [vmem:[#allocation4 + $0x40] sm:$0xf]
        %v476 = vld [vmem:[#allocation4 + $0x48] sm:$0xf]
        %478 = vset.pattern.permute.xlu0 0
        %479 = vperm.xlu0 %478, %v272
        %v480 = vpop.permute.xlu0 %479
        %vm482 = vcmask 293888
        %v484 = vsel %vm482, %v270, 0
        %vm486 = vcmask 1043456
        %v488 = vsel %vm486, %v475, 0
        %v491 = vsel %vm486, %v476, 0
        %493 = vmatprep.subr.mxu0 %v468
        %494 = vmatpush1.msra.mxu0 %v467
        %495 = vmatprep.subr.mxu0 %v470
        %496 = vmatpush1.msra.mxu0 %v469
        %497 = vmatprep.subr.mxu0 %v472
        %498 = vmatpush1.msra.mxu0 %v471
        %499 = vmatprep.subr.mxu0 %v474
        %500 = vmatpush1.msra.mxu0 %v473
        %501 = vmatprep.subr.mxu0 %v491
        %502 = vmatpush1.msra.mxu0 %v488
        %503 = vmatprep.subr.mxu0 0.0
        %504 = vmatpush1.msra.mxu0 0.0
        %505 = vmatprep.subr.mxu0 0.0
        %506 = vmatpush1.msra.mxu0 0.0
        %507 = vmatprep.subr.mxu0 0.0
        %508 = vmatpush1.msra.mxu0 0.0
        %509 = vmatprep.subr.mxu0 0.0
        %510 = vmatpush1.msra.mxu0 0.0
        %511 = vmatprep.subr.mxu0 0.0
        %512 = vmatpush1.msra.mxu0 0.0
        %513 = vmatprep.subr.mxu0 0.0
        %514 = vmatpush1.msra.mxu0 0.0
        %515 = vmatprep.subr.mxu0 0.0
        %516 = vmatpush1.msra.mxu0 0.0
        %517 = vmatprep.subr.mxu0 0.0
        %518 = vmatpush1.msra.mxu0 0.0
        %519 = vmatprep.subr.mxu0 0.0
        %520 = vmatpush1.msra.mxu0 0.0
        %521 = vmatprep.subr.mxu0 0.0
        %522 = vmatpush1.msra.mxu0 0.0
        %523 = vmatprep.subr.mxu0 0.0
        %524 = vmatpush1.msra.mxu0 0.0
        %525 = vmatprep.subr.mxu0 0.0
        %526 = vmatpush1.msra.mxu0 0.0
        %527 = vmatprep.subr.mxu0 0.0
        %528 = vmatpush1.msra.mxu0 0.0
        %529 = vmatprep.subr.mxu0 0.0
        %530 = vmatpush1.msra.mxu0 0.0
        %531 = vmatprep.subr.mxu0 0.0
        %532 = vmatpush1.msra.mxu0 0.0
        %533 = vmatprep.subr.mxu0 0.0
        %534 = vmatpush1.msra.mxu0 0.0
        %535 = vmatprep.subr.mxu0 0.0
        %536 = vmatpush1.msra.mxu0 0.0
        %537 = vmatprep.subr.mxu0 0.0
        %538 = vmatpush1.msra.mxu0 0.0
        %539 = vmatprep.subr.mxu0 0.0
        %540 = vmatpush1.msra.mxu0 0.0
        %541 = vmatprep.subr.mxu0 0.0
        %542 = vmatpush1.msra.mxu0 0.0
        %543 = vmatprep.subr.mxu0 0.0
        %544 = vmatpush1.msra.mxu0 0.0
        %545 = vmatprep.subr.mxu0 0.0
        %546 = vmatpush1.msra.mxu0 0.0
        %547 = vmatprep.subr.mxu0 0.0
        %548 = vmatpush1.msra.mxu0 0.0
        %549 = vmatprep.subr.mxu0 0.0
        %550 = vmatpush1.msra.mxu0 0.0
        %551 = vmatprep.subr.mxu0 0.0
        %552 = vmatpush1.msra.mxu0 0.0
        %553 = vmatprep.subr.mxu0 0.0
        %554 = vmatpush1.msra.mxu0 0.0
        %555 = vmatprep.subr.mxu0 0.0
        %556 = vmatpush1.msra.mxu0 0.0
        %557 = vmatprep.mubr.f32.mxu0 0.0
        %558 = vmatmul.mubr.f32.gmra.mrb[0].mxu0 %v484
        %v559 = vpop.f32.mrb[0].mxu0
        %v560 = vadd.f32 %v480, %v559
        %v561 = vpop.f32.mrb[0].mxu0
        %v562 = vadd.f32 %v480, %v561
        %563 = vdwg.mxu0
        %vm564 = vcmp.gt.f32.partialorder %v560, 0.0
        %vm565 = vcmp.gt.f32.partialorder %v562, 0.0
        %v566 = vstv %s269
        %v567 = vmul.f32 %v566, %v560
        %v568 = vmul.f32 %v566, %v562
        %v569 = vsel %vm564, %v560, %v567
        %v570 = vsel %vm565, %v562, %v568
        %v573 = vcombine.low %v569, %v570
        %575 = vst [vmem:[#allocation3 + $0x4] sm:$0xff] %v573
        %v576 = vld [vmem:[#allocation3] sm:$0xff]
        %v577 = vld [vmem:[#allocation3 + $0x8] sm:$0xf]
        %v580 = vcombine.high %v576, %v576
        %581 = vrot.lane.b32.xlu0 %v576, 17
        %v582 = vpop.permute.xlu0 %581
        %583 = vrot.lane.b32.xlu0 %v580, 17
        %v584 = vpop.permute.xlu0 %583
        %585 = vrot.lane.b32.xlu0 %v577, 17
        %v586 = vpop.permute.xlu0 %585
        %v587 = vsel %vm302, %v582, %v584
        %v588 = vsel %vm302, %v584, %v586
        %v591 = vsel %vm287, 0.0, %v587
        %v592 = vsel %vm288, 0.0, %v588
        %593 = vst [vmem:[#allocation4] sm:$0xf] %v591
        %594 = vst [vmem:[#allocation4 + $0x8] sm:$0xf] %v592
        %v595 = vld [vmem:[#allocation3] sm:$0xff]
        %v596 = vld [vmem:[#allocation3 + $0x8] sm:$0xf]
        %v599 = vcombine.low %v595, %v595
        %v600 = vcombine.low %v596, %v596
        %601 = vrot.lane.b32.xlu0 %v599, 16
        %v602 = vpop.permute.xlu0 %601
        %603 = vrot.lane.b32.xlu0 %v595, 16
        %v604 = vpop.permute.xlu0 %603
        %605 = vrot.lane.b32.xlu0 %v600, 16
        %v606 = vpop.permute.xlu0 %605
        %v607 = vsel %vm323, %v602, %v604
        %v608 = vsel %vm323, %v604, %v606
        %611 = vst [vmem:[#allocation4] sm:$0xf0] %v607
        %612 = vst [vmem:[#allocation4 + $0x8] sm:$0xf0] %v608
        %v613 = vld [vmem:[#allocation3] sm:$0xff]
        %v614 = vld [vmem:[#allocation3 + $0x8] sm:$0xf]
        %v617 = vcombine.high %v613, %v613
        %618 = vrot.lane.b32.xlu0 %v613, 15
        %v619 = vpop.permute.xlu0 %618
        %620 = vrot.lane.b32.xlu0 %v617, 15
        %v621 = vpop.permute.xlu0 %620
        %622 = vrot.lane.b32.xlu0 %v614, 15
        %v623 = vpop.permute.xlu0 %622
        %v624 = vsel %vm341, %v619, %v621
        %v625 = vsel %vm341, %v621, %v623
        %v628 = vsel %vm289, 0.0, %v624
        %v629 = vsel %vm290, 0.0, %v625
        %630 = vst [vmem:[#allocation4 + $0x10] sm:$0xf] %v628
        %631 = vst [vmem:[#allocation4 + $0x18] sm:$0xf] %v629
        %v632 = vld [vmem:[#allocation3] sm:$0xff]
        %v633 = vld [vmem:[#allocation3 + $0x8] sm:$0xf]
        %v636 = vcombine.high %v632, %v632
        %637 = vrot.lane.b32.xlu0 %v632, 1
        %v638 = vpop.permute.xlu0 %637
        %639 = vrot.lane.b32.xlu0 %v636, 1
        %v640 = vpop.permute.xlu0 %639
        %641 = vrot.lane.b32.xlu0 %v633, 1
        %v642 = vpop.permute.xlu0 %641
        %v643 = vsel %vm361, %v638, %v640
        %v644 = vsel %vm361, %v640, %v642
        %v647 = vsel %vm287, 0.0, %v643
        %v648 = vsel %vm288, 0.0, %v644
        %v651 = vrot.slane %v647, 4
        %v652 = vrot.slane %v648, 4
        %655 = vst [vmem:[#allocation4 + $0x10] sm:$0xf0] %v651
        %656 = vst [vmem:[#allocation4 + $0x18] sm:$0xf0] %v652
        %v657 = vld [vmem:[#allocation3 + $0x4] sm:$0xff]
        %v659 = vcombine.high %v657, %v657
        %661 = vst [vmem:[#allocation4 + $0x20] sm:$0xf] %v657
        %662 = vst [vmem:[#allocation4 + $0x28] sm:$0xf] %v659
        %v663 = vld [vmem:[#allocation3 + $0x4] sm:$0xff]
        %v664 = vld [vmem:[#allocation3 + $0xc] sm:$0xf]
        %v667 = vcombine.high %v663, %v663
        %668 = vrot.lane.b32.xlu0 %v663, 127
        %v669 = vpop.permute.xlu0 %668
        %670 = vrot.lane.b32.xlu0 %v667, 127
        %v671 = vpop.permute.xlu0 %670
        %672 = vrot.lane.b32.xlu0 %v664, 127
        %v673 = vpop.permute.xlu0 %672
        %v674 = vsel %vm393, %v669, %v671
        %v675 = vsel %vm393, %v671, %v673
        %v678 = vsel %vm289, 0.0, %v674
        %v679 = vsel %vm290, 0.0, %v675
        %v682 = vrot.slane %v678, 4
        %v683 = vrot.slane %v679, 4
        %686 = vst [vmem:[#allocation4 + $0x20] sm:$0xf0] %v682
        %687 = vst [vmem:[#allocation4 + $0x28] sm:$0xf0] %v683
        %v688 = vld [vmem:[#allocation3 + $0x4] sm:$0xff]
        %v689 = vld [vmem:[#allocation3 + $0xc] sm:$0xf]
        %v692 = vcombine.high %v688, %v688
        %693 = vrot.lane.b32.xlu0 %v688, 113
        %v694 = vpop.permute.xlu0 %693
        %695 = vrot.lane.b32.xlu0 %v692, 113
        %v696 = vpop.permute.xlu0 %695
        %697 = vrot.lane.b32.xlu0 %v689, 113
        %v698 = vpop.permute.xlu0 %697
        %v699 = vsel %vm419, %v694, %v696
        %v700 = vsel %vm419, %v696, %v698
        %v703 = vsel %vm287, 0.0, %v699
        %v704 = vsel %vm288, 0.0, %v700
        %705 = vst [vmem:[#allocation4 + $0x30] sm:$0xf] %v703
        %706 = vst [vmem:[#allocation4 + $0x38] sm:$0xf] %v704
        %v707 = vld [vmem:[#allocation3 + $0x4] sm:$0xff]
        %v708 = vld [vmem:[#allocation3 + $0xc] sm:$0xf]
        %v711 = vcombine.low %v707, %v707
        %v712 = vcombine.low %v708, %v708
        %713 = vrot.lane.b32.xlu0 %v711, 112
        %v714 = vpop.permute.xlu0 %713
        %715 = vrot.lane.b32.xlu0 %v707, 112
        %v716 = vpop.permute.xlu0 %715
        %717 = vrot.lane.b32.xlu0 %v712, 112
        %v718 = vpop.permute.xlu0 %717
        %v719 = vsel %vm440, %v714, %v716
        %v720 = vsel %vm440, %v716, %v718
        %723 = vst [vmem:[#allocation4 + $0x30] sm:$0xf0] %v719
        %724 = vst [vmem:[#allocation4 + $0x38] sm:$0xf0] %v720
        %v725 = vld [vmem:[#allocation3 + $0x4] sm:$0xff]
        %v726 = vld [vmem:[#allocation3 + $0xc] sm:$0xf]
        %v729 = vcombine.high %v725, %v725
        %730 = vrot.lane.b32.xlu0 %v725, 111
        %v731 = vpop.permute.xlu0 %730
        %732 = vrot.lane.b32.xlu0 %v729, 111
        %v733 = vpop.permute.xlu0 %732
        %734 = vrot.lane.b32.xlu0 %v726, 111
        %v735 = vpop.permute.xlu0 %734
        %v736 = vsel %vm458, %v731, %v733
        %v737 = vsel %vm458, %v733, %v735
        %v740 = vsel %vm289, 0.0, %v736
        %v741 = vsel %vm290, 0.0, %v737
        %742 = vst [vmem:[#allocation4 + $0x40] sm:$0xf] %v740
        %743 = vst [vmem:[#allocation4 + $0x48] sm:$0xf] %v741
        %v744 = vld [vmem:[#allocation4] sm:$0xff]
        %v745 = vld [vmem:[#allocation4 + $0x8] sm:$0xff]
        %v746 = vld [vmem:[#allocation4 + $0x10] sm:$0xff]
        %v747 = vld [vmem:[#allocation4 + $0x18] sm:$0xff]
        %v748 = vld [vmem:[#allocation4 + $0x20] sm:$0xff]
        %v749 = vld [vmem:[#allocation4 + $0x28] sm:$0xff]
        %v750 = vld [vmem:[#allocation4 + $0x30] sm:$0xff]
        %v751 = vld [vmem:[#allocation4 + $0x38] sm:$0xff]
        %v752 = vld [vmem:[#allocation4 + $0x40] sm:$0xf]
        %v753 = vld [vmem:[#allocation4 + $0x48] sm:$0xf]
        %755 = vset.pattern.permute.xlu0 0
        %756 = vperm.xlu0 %755, %v273
        %v757 = vpop.permute.xlu0 %756
        %v760 = vsel %vm482, %v271, 0
        %v763 = vsel %vm486, %v752, 0
        %v766 = vsel %vm486, %v753, 0
        %768 = vmatprep.subr.mxu0 %v745
        %769 = vmatpush1.msra.mxu0 %v744
        %770 = vmatprep.subr.mxu0 %v747
        %771 = vmatpush1.msra.mxu0 %v746
        %772 = vmatprep.subr.mxu0 %v749
        %773 = vmatpush1.msra.mxu0 %v748
        %774 = vmatprep.subr.mxu0 %v751
        %775 = vmatpush1.msra.mxu0 %v750
        %776 = vmatprep.subr.mxu0 %v766
        %777 = vmatpush1.msra.mxu0 %v763
        %778 = vmatprep.subr.mxu0 0.0
        %779 = vmatpush1.msra.mxu0 0.0
        %780 = vmatprep.subr.mxu0 0.0
        %781 = vmatpush1.msra.mxu0 0.0
        %782 = vmatprep.subr.mxu0 0.0
        %783 = vmatpush1.msra.mxu0 0.0
        %784 = vmatprep.subr.mxu0 0.0
        %785 = vmatpush1.msra.mxu0 0.0
        %786 = vmatprep.subr.mxu0 0.0
        %787 = vmatpush1.msra.mxu0 0.0
        %788 = vmatprep.subr.mxu0 0.0
        %789 = vmatpush1.msra.mxu0 0.0
        %790 = vmatprep.subr.mxu0 0.0
        %791 = vmatpush1.msra.mxu0 0.0
        %792 = vmatprep.subr.mxu0 0.0
        %793 = vmatpush1.msra.mxu0 0.0
        %794 = vmatprep.subr.mxu0 0.0
        %795 = vmatpush1.msra.mxu0 0.0
        %796 = vmatprep.subr.mxu0 0.0
        %797 = vmatpush1.msra.mxu0 0.0
        %798 = vmatprep.subr.mxu0 0.0
        %799 = vmatpush1.msra.mxu0 0.0
        %800 = vmatprep.subr.mxu0 0.0
        %801 = vmatpush1.msra.mxu0 0.0
        %802 = vmatprep.subr.mxu0 0.0
        %803 = vmatpush1.msra.mxu0 0.0
        %804 = vmatprep.subr.mxu0 0.0
        %805 = vmatpush1.msra.mxu0 0.0
        %806 = vmatprep.subr.mxu0 0.0
        %807 = vmatpush1.msra.mxu0 0.0
        %808 = vmatprep.subr.mxu0 0.0
        %809 = vmatpush1.msra.mxu0 0.0
        %810 = vmatprep.subr.mxu0 0.0
        %811 = vmatpush1.msra.mxu0 0.0
        %812 = vmatprep.subr.mxu0 0.0
        %813 = vmatpush1.msra.mxu0 0.0
        %814 = vmatprep.subr.mxu0 0.0
        %815 = vmatpush1.msra.mxu0 0.0
        %816 = vmatprep.subr.mxu0 0.0
        %817 = vmatpush1.msra.mxu0 0.0
        %818 = vmatprep.subr.mxu0 0.0
        %819 = vmatpush1.msra.mxu0 0.0
        %820 = vmatprep.subr.mxu0 0.0
        %821 = vmatpush1.msra.mxu0 0.0
        %822 = vmatprep.subr.mxu0 0.0
        %823 = vmatpush1.msra.mxu0 0.0
        %824 = vmatprep.subr.mxu0 0.0
        %825 = vmatpush1.msra.mxu0 0.0
        %826 = vmatprep.subr.mxu0 0.0
        %827 = vmatpush1.msra.mxu0 0.0
        %828 = vmatprep.subr.mxu0 0.0
        %829 = vmatpush1.msra.mxu0 0.0
        %830 = vmatprep.subr.mxu0 0.0
        %831 = vmatpush1.msra.mxu0 0.0
        %832 = vmatprep.mubr.f32.mxu0 0.0
        %833 = vmatmul.mubr.f32.gmra.mrb[0].mxu0 %v760
        %v834 = vpop.f32.mrb[0].mxu0
        %v835 = vadd.f32 %v757, %v834
        %v836 = vpop.f32.mrb[0].mxu0
        %v837 = vadd.f32 %v757, %v836
        %838 = vdwg.mxu0
        %v839 = vld [vmem:[%s240] sm:$0xff]
        %v841 = vcombine.high %v839, %v839
        %v843 = vadd.f32 %v835, %v839
        %v844 = vadd.f32 %v837, %v841
        %v847 = vcombine.low %v843, %v844
        %849 = vst [vmem:[%s268] sm:$0xff] %v847
        %s850 = sand.u32 %s163, 1
        %s851 = scalar_lea.sflag [#allocation8], %s850
        %s852 = sand.u32 %s163, 1
        %s853 = smul.addr %s852, 8
        %s854 = scalar_lea.vmem [#allocation9], %s853
        // Predicated region
        $region49: #{tpu_custom_call.1} parent=43 // pred_check
          %p855 = pneg %p173
        $region50: #{tpu_custom_call.1} parent=43 // pred_check_branch
          %857 = sbr.rel (%p855) target = $region52
        $region51: #{tpu_custom_call.1} parent=43 // pred_region
          %s859 = ssub.s32 128, 128
          %860 = vsyncadd %s851, %s859
          %s861 = smul.addr %s24, 2
          %s862 = smul.addr %s861, 64
          %s863 = scalar_lea.hbm %s6, %s862
          %s865 = sshll.u32 %s854, 4
          %s866 = int_to_ptr.vmem [resolvable:$true] %s865
          %868 = dma.vmem_to_hbm [thread:$0]  %s866, 128, %s863, %s851
        $region52: #{tpu_custom_call.1} parent=43 // pred_fallthru
          _
      $region44: #{tpu_custom_call.1} parent=5 // pred_fallthru
        _
      %p869 = scmp.le.s32.totalorder 2, %s19
      // Predicated region
      $region53: #{tpu_custom_call.1} parent=5 // pred_check
        %p870 = pneg %p869
      $region54: #{tpu_custom_call.1} parent=5 // pred_check_branch
        %872 = sbr.rel (%p870) target = $region56
      $region55: #{tpu_custom_call.1} parent=5 // pred_region
        %s873 = ssub.s32 %s19, 2
        // Predicated region
        $region57: #{tpu_custom_call.1} parent=55 // pred_check
          %p874 = pneg %p179
        $region58: #{tpu_custom_call.1} parent=55 // pred_check_branch
          %876 = sbr.rel (%p874) target = $region60
        $region59: #{tpu_custom_call.1} parent=55 // pred_region
          %s877 = sand.u32 %s164, 1
          %s878 = scalar_lea.sflag [#allocation8], %s877
          %s879 = sand.u32 %s164, 1
          %s880 = smul.addr %s879, 8
          %s881 = scalar_lea.vmem [#allocation9], %s880
          %882 = dma.done %s878, 128
        $region60: #{tpu_custom_call.1} parent=55 // pred_fallthru
          _
      $region56: #{tpu_custom_call.1} parent=5 // pred_fallthru
        _
    $region6: #{tpu_custom_call.1} parent=1 // loop_footer
      %s23 = sadd.s32 1, %s19
    $region7: #{tpu_custom_call.1} parent=1 // loop_footer_branch
      %18 = sbr.rel target = $region3
    $region8: #{tpu_custom_call.1} parent=1 // loop_exit
      _
    %883 = vsyncpa [#allocation7], 1
    %s884 = scalar_lea.sflag [#allocation7], 1
    %885 = vsyncpa %s884, 1
    %886 = vsyncpa [#allocation8], 1
    %s887 = scalar_lea.sflag [#allocation8], 1
    %888 = vsyncpa %s887, 1

</llo_original>
